<compile_context>
chip_gen: v5e
topology: v5e:2x2
jax: 0.10.0
libtpu: 0.0.40
codegen_flags: <defaults>
</compile_context>

<pallas_src>
import jax
import jax.numpy as jnp
from jax.experimental import pallas as pl
from jax.experimental.pallas import tpu as pltpu


def _round_up(n, m):
    return ((n + m - 1) // m) * m


def _make_kernel(hw_true, tile_hw, num_hw):
    """Build the Attention kernel, closed over static shape facts."""
    needs_mask = (hw_true % tile_hw) != 0
    inv_hw = 1.0 / float(hw_true)

    def kernel(x_ref, wq_t_ref, wk_t_ref, wv_t_ref, pb_t_ref, wm_t_ref,
               o_ref, max_acc, sum_acc):
        hw_idx = pl.program_id(1)

        # ---- streaming phase: pooled-statistics reduction over HW tiles ----
        x = x_ref[...].astype(jnp.float32)            # (B_tile, C, TILE_HW)
        if needs_mask:
            lane = jax.lax.broadcasted_iota(jnp.int32, x.shape, 2)
            valid = (lane + hw_idx * tile_hw) < hw_true
            x_max = jnp.where(valid, x, -jnp.inf)
            x_sum = jnp.where(valid, x, 0.0)
        else:
            x_max = x
            x_sum = x
        blk_max = jnp.max(x_max, axis=-1)             # (B_tile, C)
        blk_sum = jnp.sum(x_sum, axis=-1)             # (B_tile, C)

        @pl.when(hw_idx == 0)
        def _():
            max_acc[...] = jnp.full_like(max_acc, -jnp.inf)
            sum_acc[...] = jnp.zeros_like(sum_acc)

        max_acc[...] = jnp.maximum(max_acc[...], blk_max)
        sum_acc[...] = sum_acc[...] + blk_sum

        # ---- epilogue: AFT on the pooled vectors, once per batch tile ----
        @pl.when(hw_idx == num_hw - 1)
        def _():
            max_p = max_acc[...]                      # (B_tile, C)
            avg_p = sum_acc[...] * inv_hw             # (B_tile, C)

            wq_t = wq_t_ref[...].astype(jnp.float32)  # (C, I)
            wk_t = wk_t_ref[...].astype(jnp.float32)  # (C, I)
            wv_t = wv_t_ref[...].astype(jnp.float32)  # (C, I)
            wm_t = wm_t_ref[...].astype(jnp.float32)  # (I, C)
            # epb_t[j, i] = exp(position_biases[i, j]); computed once and
            # shared by both AFT branches.
            epb_t = jnp.exp(pb_t_ref[...].astype(jnp.float32))   # (I, I)

            def aft_full(p):
                q = jnp.dot(p, wq_t, preferred_element_type=jnp.float32)  # (B_tile, I)
                k = jnp.dot(p, wk_t, preferred_element_type=jnp.float32)
                v = jnp.dot(p, wv_t, preferred_element_type=jnp.float32)
                # exp(k_j + pb_ij) == exp(k_j) * exp(pb_ij):
                # contraction over j goes to the MXU, no (B, I, I) tensor.
                ek = jnp.exp(k)                                           # (B_tile, I)
                num = jnp.dot(ek * v, epb_t,
                              preferred_element_type=jnp.float32)         # (B_tile, I)
                den = jnp.dot(ek, epb_t,
                              preferred_element_type=jnp.float32)         # (B_tile, I)
                out = q * (num / den)
                return jnp.dot(out, wm_t,
                               preferred_element_type=jnp.float32)        # (B_tile, C)

            y = jax.nn.sigmoid(aft_full(max_p) + aft_full(avg_p))
            o_ref[...] = y.astype(o_ref.dtype)

    return kernel


def attention_forward(x, wq, wk, wv, pb, wm, *, tile_hw=None, b_tile=None):
    """Pallas forward of the Attention module.

    x  : (B, C, H, W), float32 or bfloat16.
    wq, wk, wv : (I, C) 1x1-conv weights with I = C // 2 (PyTorch (out, in)).
    pb : (I, I) position biases.
    wm : (C, I) conv_mask weight.
    Returns (B, C, 1, 1) in x.dtype.
    """
    B, C, H, W = x.shape
    I = C // 2
    HW = H * W
    x_flat = x.reshape(B, C, HW)

    itemsize = jnp.dtype(x.dtype).itemsize
    if b_tile is None:
        b_tile = min(B, 8)
    if tile_hw is None:
        # Size the double-buffered x tile to ~24 MiB: comfortably inside the
        # 48 MiB scoped limit below and v7x's 64 MiB physical VMEM, while big
        # enough (>=512 lanes when possible) to sit near the HBM roofline.
        budget = 24 * 1024 * 1024
        max_hw = max(128, budget // (2 * b_tile * C * itemsize))
        max_hw = (max_hw // 128) * 128
        tile_hw = min(max_hw, 2048, _round_up(HW, 128))
    tile_hw = max(128, (tile_hw // 128) * 128)   # lane axis multiple of 128

    num_b = pl.cdiv(B, b_tile)
    num_hw = pl.cdiv(HW, tile_hw)

    # Pre-transpose the tiny weights on the host so the kernel needs no
    # in-kernel transposes and contracts along natural axes.
    wq_t = wq.T          # (C, I)
    wk_t = wk.T          # (C, I)
    wv_t = wv.T          # (C, I)
    pb_t = pb.T          # (I, I); pb_t[j, i] = pb[i, j]
    wm_t = wm.T          # (I, C)

    kernel = _make_kernel(HW, tile_hw, num_hw)

    out = pl.pallas_call(
        kernel,
        out_shape=jax.ShapeDtypeStruct((B, C), x.dtype),
        grid_spec=pltpu.PrefetchScalarGridSpec(
            num_scalar_prefetch=0,
            grid=(num_b, num_hw),               # HW reduction axis last
            in_specs=[
                pl.BlockSpec((b_tile, C, tile_hw), lambda b, h: (b, 0, h)),
                pl.BlockSpec((C, I), lambda b, h: (0, 0)),
                pl.BlockSpec((C, I), lambda b, h: (0, 0)),
                pl.BlockSpec((C, I), lambda b, h: (0, 0)),
                pl.BlockSpec((I, I), lambda b, h: (0, 0)),
                pl.BlockSpec((I, C), lambda b, h: (0, 0)),
            ],
            out_specs=pl.BlockSpec((b_tile, C), lambda b, h: (b, 0)),
            scratch_shapes=[
                pltpu.VMEM((b_tile, C), jnp.float32),   # running max
                pltpu.VMEM((b_tile, C), jnp.float32),   # running sum
            ],
        ),
        compiler_params=pltpu.CompilerParams(
            dimension_semantics=("parallel", "arbitrary"),
            vmem_limit_bytes=48 * 1024 * 1024,
        ),
    )(x_flat, wq_t, wk_t, wv_t, pb_t, wm_t)

    return out.reshape(B, C, 1, 1)


def reference_forward(x, wq, wk, wv, pb, wm):
    """Pure-JAX reference mirroring the PyTorch module."""
    B, C, H, W = x.shape
    xf = x.reshape(B, C, -1)
    max_p = jnp.max(xf, axis=-1)
    avg_p = jnp.mean(xf, axis=-1)

    def aft(p):
        q = p @ wq.T
        k = p @ wk.T
        v = p @ wv.T
        e = jnp.exp(k[:, None, :] + pb[None, :, :])
        num = jnp.sum(e * v[:, None, :], axis=-1)
        den = jnp.sum(e, axis=-1)
        return (q * (num / den)) @ wm.T

    return jax.nn.sigmoid(aft(max_p) + aft(avg_p)).reshape(B, C, 1, 1)


if __name__ == "__main__":
    B, C, H, W = 2, 4, 16, 16
    I = C // 2

    key = jax.random.PRNGKey(0)
    kx, kq, kk, kv, km = jax.random.split(key, 5)

    x = jax.random.normal(kx, (B, C, H, W), dtype=jnp.float32)
    # 1x1 conv weights (out, in); deterministic synthetic init.
    wq = jax.random.normal(kq, (I, C), dtype=jnp.float32) * 0.1
    wk = jax.random.normal(kk, (I, C), dtype=jnp.float32) * 0.1
    wv = jax.random.normal(kv, (I, C), dtype=jnp.float32) * 0.1
    wm = jax.random.normal(km, (C, I), dtype=jnp.float32) * 0.1
    # position_biases initialized to ones, matching nn.Parameter(torch.ones(I, I)).
    pb = jnp.ones((I, I), dtype=jnp.float32)

    ref = jax.block_until_ready(reference_forward(x, wq, wk, wv, pb, wm))

    # Auto-picked tile (single HW step at this toy size).
    out = jax.block_until_ready(attention_forward(x, wq, wk, wv, pb, wm))
    assert out.shape == (B, C, 1, 1)
    assert jnp.allclose(out, ref, atol=1e-5, rtol=1e-5), (
        f"mismatch: max abs diff {jnp.max(jnp.abs(out - ref))}")

    # Forced 128-wide HW tiles: exercises the multi-step pipelined reduction
    # (grid HW axis of length 2) and the accumulator epilogue.
    out2 = jax.block_until_ready(
        attention_forward(x, wq, wk, wv, pb, wm, tile_hw=128))
    assert jnp.allclose(out2, ref, atol=1e-5, rtol=1e-5), (
        f"tiled mismatch: max abs diff {jnp.max(jnp.abs(out2 - ref))}")

    print("KERNEL_OK")
</pallas_src>

<mosaic_0001>
module attributes {stable_mosaic.version = 11 : i64} {
  func.func @kernel(%arg0: i32, %arg1: i32, %arg2: memref<2x4x256xf32, #tpu.memory_space<vmem>>, %arg3: memref<4x2xf32, #tpu.memory_space<vmem>>, %arg4: memref<4x2xf32, #tpu.memory_space<vmem>>, %arg5: memref<4x2xf32, #tpu.memory_space<vmem>>, %arg6: memref<2x2xf32, #tpu.memory_space<vmem>>, %arg7: memref<2x4xf32, #tpu.memory_space<vmem>>, %arg8: memref<2x4xf32, #tpu.memory_space<vmem>>, %arg9: memref<2x4xf32, #tpu.memory_space<vmem>>, %arg10: memref<2x4xf32, #tpu.memory_space<vmem>>) attributes {dimension_semantics = [#tpu.dimension_semantics<parallel>, #tpu.dimension_semantics<arbitrary>], iteration_bounds = array<i64: 1, 1>, scalar_prefetch = 0 : i64, scratch_operands = 2 : i64, tpu.core_type = #tpu.core_type<tc>, window_params = [{transform_indices = @transform_0, window_bounds = array<i64: 2, 4, 256>}, {pipeline_mode = #tpu.pipeline_mode<synchronous>, transform_indices = @transform_1, window_bounds = array<i64: 4, 2>}, {pipeline_mode = #tpu.pipeline_mode<synchronous>, transform_indices = @transform_2, window_bounds = array<i64: 4, 2>}, {pipeline_mode = #tpu.pipeline_mode<synchronous>, transform_indices = @transform_3, window_bounds = array<i64: 4, 2>}, {pipeline_mode = #tpu.pipeline_mode<synchronous>, transform_indices = @transform_4, window_bounds = array<i64: 2, 2>}, {pipeline_mode = #tpu.pipeline_mode<synchronous>, transform_indices = @transform_5, window_bounds = array<i64: 2, 4>}, {transform_indices = @transform_6, window_bounds = array<i64: 2, 4>}]} {
    %c0 = arith.constant 0 : index
    %c0_0 = arith.constant 0 : index
    %c0_1 = arith.constant 0 : index
    %0 = vector.load %arg2[%c0, %c0_0, %c0_1] : memref<2x4x256xf32, #tpu.memory_space<vmem>>, vector<2x4x256xf32>
    %cst = arith.constant dense<0xFF800000> : vector<2x4xf32>
    %1 = vector.multi_reduction <maximumf>, %0, %cst [2] : vector<2x4x256xf32> to vector<2x4xf32>
    %cst_2 = arith.constant dense<0.000000e+00> : vector<2x4xf32>
    %2 = vector.multi_reduction <add>, %0, %cst_2 [2] : vector<2x4x256xf32> to vector<2x4xf32>
    %c0_i32 = arith.constant 0 : i32
    %3 = arith.cmpi eq, %arg1, %c0_i32 : i32
    %4 = arith.extui %3 : i1 to i32
    %c0_i32_3 = arith.constant 0 : i32
    %5 = arith.cmpi ne, %4, %c0_i32_3 : i32
    scf.if %5 {
      %cst_14 = arith.constant 0xFF800000 : f32
      %15 = vector.broadcast %cst_14 : f32 to vector<2x4xf32>
      %c0_15 = arith.constant 0 : index
      %c0_16 = arith.constant 0 : index
      %16 = vector.load %arg9[%c0_15, %c0_16] : memref<2x4xf32, #tpu.memory_space<vmem>>, vector<2x4xf32>
      tpu.vector_store %arg9[%c0_15, %c0_16], %15 {strides = array<i32>} : memref<2x4xf32, #tpu.memory_space<vmem>>, vector<2x4xf32>,
      %cst_17 = arith.constant 0.000000e+00 : f32
      %17 = vector.broadcast %cst_17 : f32 to vector<2x4xf32>
      %c0_18 = arith.constant 0 : index
      %c0_19 = arith.constant 0 : index
      %18 = vector.load %arg10[%c0_18, %c0_19] : memref<2x4xf32, #tpu.memory_space<vmem>>, vector<2x4xf32>
      tpu.vector_store %arg10[%c0_18, %c0_19], %17 {strides = array<i32>} : memref<2x4xf32, #tpu.memory_space<vmem>>, vector<2x4xf32>,
    } else {
    }
    %c0_4 = arith.constant 0 : index
    %c0_5 = arith.constant 0 : index
    %6 = vector.load %arg9[%c0_4, %c0_5] : memref<2x4xf32, #tpu.memory_space<vmem>>, vector<2x4xf32>
    %7 = arith.maximumf %6, %1 : vector<2x4xf32>
    %c0_6 = arith.constant 0 : index
    %c0_7 = arith.constant 0 : index
    %8 = vector.load %arg9[%c0_6, %c0_7] : memref<2x4xf32, #tpu.memory_space<vmem>>, vector<2x4xf32>
    tpu.vector_store %arg9[%c0_6, %c0_7], %7 {strides = array<i32>} : memref<2x4xf32, #tpu.memory_space<vmem>>, vector<2x4xf32>,
    %c0_8 = arith.constant 0 : index
    %c0_9 = arith.constant 0 : index
    %9 = vector.load %arg10[%c0_8, %c0_9] : memref<2x4xf32, #tpu.memory_space<vmem>>, vector<2x4xf32>
    %10 = arith.addf %9, %2 : vector<2x4xf32>
    %c0_10 = arith.constant 0 : index
    %c0_11 = arith.constant 0 : index
    %11 = vector.load %arg10[%c0_10, %c0_11] : memref<2x4xf32, #tpu.memory_space<vmem>>, vector<2x4xf32>
    tpu.vector_store %arg10[%c0_10, %c0_11], %10 {strides = array<i32>} : memref<2x4xf32, #tpu.memory_space<vmem>>, vector<2x4xf32>,
    %c0_i32_12 = arith.constant 0 : i32
    %12 = arith.cmpi eq, %arg1, %c0_i32_12 : i32
    %13 = arith.extui %12 : i1 to i32
    %c0_i32_13 = arith.constant 0 : i32
    %14 = arith.cmpi ne, %13, %c0_i32_13 : i32
    scf.if %14 {
      %c0_14 = arith.constant 0 : index
      %c0_15 = arith.constant 0 : index
      %15 = vector.load %arg9[%c0_14, %c0_15] : memref<2x4xf32, #tpu.memory_space<vmem>>, vector<2x4xf32>
      %c0_16 = arith.constant 0 : index
      %c0_17 = arith.constant 0 : index
      %16 = vector.load %arg10[%c0_16, %c0_17] : memref<2x4xf32, #tpu.memory_space<vmem>>, vector<2x4xf32>
      %cst_18 = arith.constant 3.906250e-03 : f32
      %17 = vector.broadcast %cst_18 : f32 to vector<2x4xf32>
      %18 = arith.mulf %16, %17 : vector<2x4xf32>
      %c0_19 = arith.constant 0 : index
      %c0_20 = arith.constant 0 : index
      %19 = vector.load %arg3[%c0_19, %c0_20] : memref<4x2xf32, #tpu.memory_space<vmem>>, vector<4x2xf32>
      %c0_21 = arith.constant 0 : index
      %c0_22 = arith.constant 0 : index
      %20 = vector.load %arg4[%c0_21, %c0_22] : memref<4x2xf32, #tpu.memory_space<vmem>>, vector<4x2xf32>
      %c0_23 = arith.constant 0 : index
      %c0_24 = arith.constant 0 : index
      %21 = vector.load %arg5[%c0_23, %c0_24] : memref<4x2xf32, #tpu.memory_space<vmem>>, vector<4x2xf32>
      %c0_25 = arith.constant 0 : index
      %c0_26 = arith.constant 0 : index
      %22 = vector.load %arg7[%c0_25, %c0_26] : memref<2x4xf32, #tpu.memory_space<vmem>>, vector<2x4xf32>
      %c0_27 = arith.constant 0 : index
      %c0_28 = arith.constant 0 : index
      %23 = vector.load %arg6[%c0_27, %c0_28] : memref<2x2xf32, #tpu.memory_space<vmem>>, vector<2x2xf32>
      %24 = math.exp %23 : vector<2x2xf32>
      %cst_29 = arith.constant dense<0.000000e+00> : vector<2x2xf32>
      %25 = tpu.matmul %15, %19, %cst_29 {dimension_numbers = #tpu.dot_dimension_numbers<[1], [0], [0], [1], [0, 0, 1, 1], [], []>} : vector<2x4xf32>, vector<4x2xf32>, vector<2x2xf32> -> vector<2x2xf32>
      %cst_30 = arith.constant dense<0.000000e+00> : vector<2x2xf32>
      %26 = tpu.matmul %15, %20, %cst_30 {dimension_numbers = #tpu.dot_dimension_numbers<[1], [0], [0], [1], [0, 0, 1, 1], [], []>} : vector<2x4xf32>, vector<4x2xf32>, vector<2x2xf32> -> vector<2x2xf32>
      %cst_31 = arith.constant dense<0.000000e+00> : vector<2x2xf32>
      %27 = tpu.matmul %15, %21, %cst_31 {dimension_numbers = #tpu.dot_dimension_numbers<[1], [0], [0], [1], [0, 0, 1, 1], [], []>} : vector<2x4xf32>, vector<4x2xf32>, vector<2x2xf32> -> vector<2x2xf32>
      %28 = math.exp %26 : vector<2x2xf32>
      %29 = arith.mulf %28, %27 : vector<2x2xf32>
      %cst_32 = arith.constant dense<0.000000e+00> : vector<2x2xf32>
      %30 = tpu.matmul %29, %24, %cst_32 {dimension_numbers = #tpu.dot_dimension_numbers<[1], [0], [0], [1], [0, 0, 1, 1], [], []>} : vector<2x2xf32>, vector<2x2xf32>, vector<2x2xf32> -> vector<2x2xf32>
      %cst_33 = arith.constant dense<0.000000e+00> : vector<2x2xf32>
      %31 = tpu.matmul %28, %24, %cst_33 {dimension_numbers = #tpu.dot_dimension_numbers<[1], [0], [0], [1], [0, 0, 1, 1], [], []>} : vector<2x2xf32>, vector<2x2xf32>, vector<2x2xf32> -> vector<2x2xf32>
      %32 = arith.divf %30, %31 : vector<2x2xf32>
      %33 = arith.mulf %25, %32 : vector<2x2xf32>
      %cst_34 = arith.constant dense<0.000000e+00> : vector<2x4xf32>
      %34 = tpu.matmul %33, %22, %cst_34 {dimension_numbers = #tpu.dot_dimension_numbers<[1], [0], [0], [1], [0, 0, 1, 1], [], []>} : vector<2x2xf32>, vector<2x4xf32>, vector<2x4xf32> -> vector<2x4xf32>
      %cst_35 = arith.constant dense<0.000000e+00> : vector<2x2xf32>
      %35 = tpu.matmul %18, %19, %cst_35 {dimension_numbers = #tpu.dot_dimension_numbers<[1], [0], [0], [1], [0, 0, 1, 1], [], []>} : vector<2x4xf32>, vector<4x2xf32>, vector<2x2xf32> -> vector<2x2xf32>
      %cst_36 = arith.constant dense<0.000000e+00> : vector<2x2xf32>
      %36 = tpu.matmul %18, %20, %cst_36 {dimension_numbers = #tpu.dot_dimension_numbers<[1], [0], [0], [1], [0, 0, 1, 1], [], []>} : vector<2x4xf32>, vector<4x2xf32>, vector<2x2xf32> -> vector<2x2xf32>
      %cst_37 = arith.constant dense<0.000000e+00> : vector<2x2xf32>
      %37 = tpu.matmul %18, %21, %cst_37 {dimension_numbers = #tpu.dot_dimension_numbers<[1], [0], [0], [1], [0, 0, 1, 1], [], []>} : vector<2x4xf32>, vector<4x2xf32>, vector<2x2xf32> -> vector<2x2xf32>
      %38 = math.exp %36 : vector<2x2xf32>
      %39 = arith.mulf %38, %37 : vector<2x2xf32>
      %cst_38 = arith.constant dense<0.000000e+00> : vector<2x2xf32>
      %40 = tpu.matmul %39, %24, %cst_38 {dimension_numbers = #tpu.dot_dimension_numbers<[1], [0], [0], [1], [0, 0, 1, 1], [], []>} : vector<2x2xf32>, vector<2x2xf32>, vector<2x2xf32> -> vector<2x2xf32>
      %cst_39 = arith.constant dense<0.000000e+00> : vector<2x2xf32>
      %41 = tpu.matmul %38, %24, %cst_39 {dimension_numbers = #tpu.dot_dimension_numbers<[1], [0], [0], [1], [0, 0, 1, 1], [], []>} : vector<2x2xf32>, vector<2x2xf32>, vector<2x2xf32> -> vector<2x2xf32>
      %42 = arith.divf %40, %41 : vector<2x2xf32>
      %43 = arith.mulf %35, %42 : vector<2x2xf32>
      %cst_40 = arith.constant dense<0.000000e+00> : vector<2x4xf32>
      %44 = tpu.matmul %43, %22, %cst_40 {dimension_numbers = #tpu.dot_dimension_numbers<[1], [0], [0], [1], [0, 0, 1, 1], [], []>} : vector<2x2xf32>, vector<2x4xf32>, vector<2x4xf32> -> vector<2x4xf32>
      %45 = arith.addf %34, %44 : vector<2x4xf32>
      %46 = arith.negf %45 : vector<2x4xf32>
      %47 = math.exp %46 : vector<2x4xf32>
      %cst_41 = arith.constant 1.000000e+00 : f32
      %48 = vector.broadcast %cst_41 : f32 to vector<2x4xf32>
      %49 = arith.addf %48, %47 : vector<2x4xf32>
      %50 = arith.divf %48, %49 : vector<2x4xf32>
      %c0_42 = arith.constant 0 : index
      %c0_43 = arith.constant 0 : index
      %51 = vector.load %arg8[%c0_42, %c0_43] : memref<2x4xf32, #tpu.memory_space<vmem>>, vector<2x4xf32>
      tpu.vector_store %arg8[%c0_42, %c0_43], %50 {strides = array<i32>} : memref<2x4xf32, #tpu.memory_space<vmem>>, vector<2x4xf32>,
    } else {
    }
    return
  }
  func.func @transform_0(%arg0: i32, %arg1: i32) -> (i32, i32, i32) {
    %c0_i32 = arith.constant 0 : i32
    %c0_i32_0 = arith.constant 0 : i32
    return %arg0, %c0_i32, %arg1 : i32, i32, i32
  }
  func.func @transform_1(%arg0: i32, %arg1: i32) -> (i32, i32) {
    %c0_i32 = arith.constant 0 : i32
    %c0_i32_0 = arith.constant 0 : i32
    %c0_i32_1 = arith.constant 0 : i32
    return %c0_i32, %c0_i32_0 : i32, i32
  }
  func.func @transform_2(%arg0: i32, %arg1: i32) -> (i32, i32) {
    %c0_i32 = arith.constant 0 : i32
    %c0_i32_0 = arith.constant 0 : i32
    %c0_i32_1 = arith.constant 0 : i32
    return %c0_i32, %c0_i32_0 : i32, i32
  }
  func.func @transform_3(%arg0: i32, %arg1: i32) -> (i32, i32) {
    %c0_i32 = arith.constant 0 : i32
    %c0_i32_0 = arith.constant 0 : i32
    %c0_i32_1 = arith.constant 0 : i32
    return %c0_i32, %c0_i32_0 : i32, i32
  }
  func.func @transform_4(%arg0: i32, %arg1: i32) -> (i32, i32) {
    %c0_i32 = arith.constant 0 : i32
    %c0_i32_0 = arith.constant 0 : i32
    %c0_i32_1 = arith.constant 0 : i32
    return %c0_i32, %c0_i32_0 : i32, i32
  }
  func.func @transform_5(%arg0: i32, %arg1: i32) -> (i32, i32) {
    %c0_i32 = arith.constant 0 : i32
    %c0_i32_0 = arith.constant 0 : i32
    %c0_i32_1 = arith.constant 0 : i32
    return %c0_i32, %c0_i32_0 : i32, i32
  }
  func.func @transform_6(%arg0: i32, %arg1: i32) -> (i32, i32) {
    %c0_i32 = arith.constant 0 : i32
    %c0_i32_0 = arith.constant 0 : i32
    return %arg0, %c0_i32 : i32, i32
  }
}

</mosaic_0001>

<llo_original>
// kernel: tpu_custom_call.1
$region0: #{tpu_custom_call.1}
  #allocation0 [shape = 'u32[]', space=smem, size = 0x4, offset = 0x4, fixed_abs, tag = 'smem constant byte address 0x4 - core index']
  #allocation1 [shape = 'u32[72,128]{1,0:T(1,128)}', space=vmem, size = 0x9000, scoped, tag = 'internal scratch']
  #allocation2 [shape = 'f32[2,4]{1,0:T(2,128)}', space=vmem, size = 0x400, scoped, tag = 'scratch operand']
  #allocation3 [shape = 'f32[2,4]{1,0:T(2,128)}', space=vmem, size = 0x400, scoped, tag = 'scratch operand']
  %s0 = inlined_call_operand.hbm [shape: f32[2,4,256], index: 0, kind: input, shape index: {}]
  %s1 = inlined_call_operand.vmem [shape: f32[4,2], index: 1, kind: input, shape index: {}]
  %s2 = inlined_call_operand.vmem [shape: f32[4,2], index: 2, kind: input, shape index: {}]
  %s3 = inlined_call_operand.vmem [shape: f32[4,2], index: 3, kind: input, shape index: {}]
  %s4 = inlined_call_operand.vmem [shape: f32[2,2], index: 4, kind: input, shape index: {}]
  %s5 = inlined_call_operand.vmem [shape: f32[2,4], index: 5, kind: input, shape index: {}]
  %s6 = inlined_call_operand.hbm [shape: f32[2,4], index: 6, kind: output, shape index: {}]
  %s7 = sld [smem:[#allocation0]]
  $region46: #{tpu_custom_call.1} parent=0
    _
  %s9 = ssub.s32 1, %s7
  %s10 = scalar_select 0, %s9, %s7
  $region1: #{tpu_custom_call.1} parent=0
    #allocation4 [shape = 'u8[8192]{0}', space=vmem, size = 0x2000, scoped, tag = 'input window, operand 0, single buffered']
    #allocation5 [shape = 's32[1]{0}', space=sflag, size = 0x4, scoped, tag = 'scoped memory for tpu_custom_call.1']
    #allocation6 [shape = 's32[1]{0}', space=sflag, size = 0x4, scoped, tag = 'scoped memory for tpu_custom_call.1']
    #allocation7 [shape = 'u8[1024]{0}', space=vmem, size = 0x400, scoped, tag = 'output window, operand 0, single buffered']
    %11 = vsyncpa [#allocation5], 0
    %12 = vsyncpa [#allocation6], 0
    // Predicated region
    $region2: #{tpu_custom_call.1} parent=1 // pred_check
      _
    $region3: #{tpu_custom_call.1} parent=1 // pred_check_branch
      %14 = sbr.rel (0) target = $region5
    $region4: #{tpu_custom_call.1} parent=1 // pred_region
      %16 = vsyncadd [#allocation5], 0
      %s17 = sshll.u32 %s0, 4
      %s18 = int_to_ptr.hbm [resolvable:$true] %s17
      %s19 = sshll.u32 [#allocation4], 4
      %s20 = int_to_ptr.vmem [resolvable:$true] %s19
      %25 = dma.hbm_to_vmem [thread:$0]  %s18, 256, %s20, [#allocation5], 128, 128, 8
    $region5: #{tpu_custom_call.1} parent=1 // pred_fallthru
      _
    // Predicated region
    $region6: #{tpu_custom_call.1} parent=1 // pred_check
      _
    $region7: #{tpu_custom_call.1} parent=1 // pred_check_branch
      %27 = sbr.rel (0) target = $region9
    $region8: #{tpu_custom_call.1} parent=1 // pred_region
      _
    $region9: #{tpu_custom_call.1} parent=1 // pred_fallthru
      _
    // Predicated region
    $region10: #{tpu_custom_call.1} parent=1 // pred_check
      _
    $region11: #{tpu_custom_call.1} parent=1 // pred_check_branch
      %29 = sbr.rel (0) target = $region13
    $region12: #{tpu_custom_call.1} parent=1 // pred_region
      _
    $region13: #{tpu_custom_call.1} parent=1 // pred_fallthru
      _
    // Predicated region
    $region14: #{tpu_custom_call.1} parent=1 // pred_check
      _
    $region15: #{tpu_custom_call.1} parent=1 // pred_check_branch
      %31 = sbr.rel (0) target = $region17
    $region16: #{tpu_custom_call.1} parent=1 // pred_region
      _
    $region17: #{tpu_custom_call.1} parent=1 // pred_fallthru
      _
    // Predicated region
    $region18: #{tpu_custom_call.1} parent=1 // pred_check
      _
    $region19: #{tpu_custom_call.1} parent=1 // pred_check_branch
      %33 = sbr.rel (0) target = $region21
    $region20: #{tpu_custom_call.1} parent=1 // pred_region
      _
    $region21: #{tpu_custom_call.1} parent=1 // pred_fallthru
      _
    // Predicated region
    $region22: #{tpu_custom_call.1} parent=1 // pred_check
      _
    $region23: #{tpu_custom_call.1} parent=1 // pred_check_branch
      %35 = sbr.rel (0) target = $region25
    $region24: #{tpu_custom_call.1} parent=1 // pred_region
      _
    $region25: #{tpu_custom_call.1} parent=1 // pred_fallthru
      _
    // Predicated region
    $region26: #{tpu_custom_call.1} parent=1 // pred_check
      _
    $region27: #{tpu_custom_call.1} parent=1 // pred_check_branch
      %37 = sbr.rel (0) target = $region29
    $region28: #{tpu_custom_call.1} parent=1 // pred_region
      %39 = dma.done [#allocation5], 256
    $region29: #{tpu_custom_call.1} parent=1 // pred_fallthru
      _
    %v40 = vld [vmem:[#allocation4] sm:$0xff]
    %v41 = vld [vmem:[#allocation4 + $0x8] sm:$0xff]
    %44 = vst [vmem:[#allocation1] ss:$2 sm:$0xff] %v40
    %v45 = vld.sshfl [vmem:[#allocation1] sm:$0xff pattern:$0x75316420]
    %v46 = vld.sshfl [vmem:[#allocation1 + $0x8] sm:$0xff pattern:$0x75316420]
    %s47 = scalar_lea.vmem [#allocation1], 16
    %48 = vst [vmem:[%s47] ss:$2 sm:$0xff] %v41
    %v49 = vld.sshfl [vmem:[#allocation1 + $0x10] sm:$0xff pattern:$0x75316420]
    %v50 = vld.sshfl [vmem:[#allocation1 + $0x18] sm:$0xff pattern:$0x75316420]
    %vm55 = vcmask 1043456
    %v56 = vsel %vm55, %v45, -inf
    %v57 = vsel %vm55, %v46, -inf
    %v58 = vmax.f32 %v56, %v57
    %59 = vmax.xlane.f32.xlu0 %v58
    %v60 = vpop.xlane.xlu0 %59
    %v61 = vsel %vm55, %v49, -inf
    %v62 = vsel %vm55, %v50, -inf
    %v63 = vmax.f32 %v61, %v62
    %64 = vmax.xlane.f32.xlu0 %v63
    %v65 = vpop.xlane.xlu0 %64
    %66 = vst [vmem:[#allocation1] ss:$2 sm:$0xff] %v40
    %v67 = vld.sshfl [vmem:[#allocation1] sm:$0xff pattern:$0x75316420]
    %v68 = vld.sshfl [vmem:[#allocation1 + $0x8] sm:$0xff pattern:$0x75316420]
    %s69 = scalar_lea.vmem [#allocation1], 16
    %70 = vst [vmem:[%s69] ss:$2 sm:$0xff] %v41
    %v71 = vld.sshfl [vmem:[#allocation1 + $0x10] sm:$0xff pattern:$0x75316420]
    %v72 = vld.sshfl [vmem:[#allocation1 + $0x18] sm:$0xff pattern:$0x75316420]
    %v77 = vsel %vm55, %v67, 0.0
    %v78 = vsel %vm55, %v68, 0.0
    %v79 = vadd.f32 %v77, %v78
    %80 = vadd.xlane.f32.xlu0 %v79
    %v81 = vpop.xlane.xlu0 %80
    %v82 = vsel %vm55, %v71, 0.0
    %v83 = vsel %vm55, %v72, 0.0
    %v84 = vadd.f32 %v82, %v83
    %85 = vadd.xlane.f32.xlu0 %v84
    %v86 = vpop.xlane.xlu0 %85
    %p87 = scmp.eq.s32.totalorder 0, 0
    // Predicated region
    $region30: #{tpu_custom_call.1} parent=1 // pred_check
      %p88 = pneg %p87
    $region31: #{tpu_custom_call.1} parent=1 // pred_check_branch
      %90 = sbr.rel (%p88) target = $region33
    $region32: #{tpu_custom_call.1} parent=1 // pred_region
      %vm91 = vcmask 25600
      %92 = vst.msk [vmem:[#allocation2] sm:$0x3] %vm91, -inf
      %93 = vst.msk [vmem:[#allocation3] sm:$0x3] %vm91, 0.0
    $region33: #{tpu_custom_call.1} parent=1 // pred_fallthru
      _
    %v94 = vld [vmem:[#allocation2] sm:$0x3]
    %v97 = vlaneseq
    %v98 = vand.u32 %v97, 127
    %v99 = vperm.slane %v60, %v98
    %v100 = vperm.slane %v65, %v98
    %vm101 = vcmask 1041409
    %v102 = vsel %vm101, %v100, %v99
    %v104 = vmax.f32 %v94, %v102
    %vm105 = vcmask 25600
    %106 = vst.msk [vmem:[#allocation2] sm:$0x3] %vm105, %v104
    %v107 = vld [vmem:[#allocation3] sm:$0x3]
    %v110 = vperm.slane %v81, %v98
    %v111 = vperm.slane %v86, %v98
    %v112 = vsel %vm101, %v111, %v110
    %v114 = vadd.f32 %v107, %v112
    %115 = vst.msk [vmem:[#allocation3] sm:$0x3] %vm105, %v114
    // Predicated region
    $region34: #{tpu_custom_call.1} parent=1 // pred_check
      %p116 = pneg %p87
    $region35: #{tpu_custom_call.1} parent=1 // pred_check_branch
      %118 = sbr.rel (%p116) target = $region37
    $region36: #{tpu_custom_call.1} parent=1 // pred_region
      %v119 = vld [vmem:[#allocation2] sm:$0x3]
      %v120 = vld [vmem:[#allocation3] sm:$0x3]
      %v121 = vmul.f32 %v120, 0.00390625
      %v122 = vld [vmem:[%s1] sm:$0xf]
      %v123 = vld [vmem:[%s2] sm:$0xf]
      %v124 = vld [vmem:[%s3] sm:$0xf]
      %v125 = vld [vmem:[%s5] sm:$0x3]
      %v126 = vld [vmem:[%s4] sm:$0x3]
      %v127 = vmul.f32 %v126, 1.442695
      %v128 = vpow.pop %v127
      %vm129 = vcmask 31744
      %v131 = vsel %vm129, %v119, 0
      %v134 = vsel %vm55, %v122, 0
      %136 = vmatpush.msra.mxu0 0.0
      %137 = vmatpush.msra.mxu0 0.0
      %138 = vmatpush.msra.mxu0 0.0
      %139 = vmatpush.msra.mxu0 0.0
      %140 = vmatpush.msra.mxu0 0.0
      %141 = vmatpush.msra.mxu0 0.0
      %142 = vmatpush.msra.mxu0 0.0
      %143 = vmatpush.msra.mxu0 0.0
      %144 = vmatpush.msra.mxu0 0.0
      %145 = vmatpush.msra.mxu0 0.0
      %146 = vmatpush.msra.mxu0 0.0
      %147 = vmatpush.msra.mxu0 0.0
      %148 = vmatpush.msra.mxu0 0.0
      %149 = vmatpush.msra.mxu0 0.0
      %150 = vmatpush.msra.mxu0 0.0
      %151 = vmatpush.msra.mxu0 %v134
      %152 = vmatmul.f32.gmra.mxu0 %v131
      %v153 = vpop.f32.mrf.mxu0
      %v154 = vadd.f32 0.0, %v153
      %155 = vdwg.mxu0
      %v157 = vsel %vm55, %v123, 0
      %159 = vmatpush.msra.mxu0 0.0
      %160 = vmatpush.msra.mxu0 0.0
      %161 = vmatpush.msra.mxu0 0.0
      %162 = vmatpush.msra.mxu0 0.0
      %163 = vmatpush.msra.mxu0 0.0
      %164 = vmatpush.msra.mxu0 0.0
      %165 = vmatpush.msra.mxu0 0.0
      %166 = vmatpush.msra.mxu0 0.0
      %167 = vmatpush.msra.mxu0 0.0
      %168 = vmatpush.msra.mxu0 0.0
      %169 = vmatpush.msra.mxu0 0.0
      %170 = vmatpush.msra.mxu0 0.0
      %171 = vmatpush.msra.mxu0 0.0
      %172 = vmatpush.msra.mxu0 0.0
      %173 = vmatpush.msra.mxu0 0.0
      %174 = vmatpush.msra.mxu0 %v157
      %175 = vmatmul.f32.gmra.mxu0 %v131
      %v176 = vpop.f32.mrf.mxu0
      %v177 = vadd.f32 0.0, %v176
      %178 = vdwg.mxu0
      %v180 = vsel %vm55, %v124, 0
      %182 = vmatpush.msra.mxu0 0.0
      %183 = vmatpush.msra.mxu0 0.0
      %184 = vmatpush.msra.mxu0 0.0
      %185 = vmatpush.msra.mxu0 0.0
      %186 = vmatpush.msra.mxu0 0.0
      %187 = vmatpush.msra.mxu0 0.0
      %188 = vmatpush.msra.mxu0 0.0
      %189 = vmatpush.msra.mxu0 0.0
      %190 = vmatpush.msra.mxu0 0.0
      %191 = vmatpush.msra.mxu0 0.0
      %192 = vmatpush.msra.mxu0 0.0
      %193 = vmatpush.msra.mxu0 0.0
      %194 = vmatpush.msra.mxu0 0.0
      %195 = vmatpush.msra.mxu0 0.0
      %196 = vmatpush.msra.mxu0 0.0
      %197 = vmatpush.msra.mxu0 %v180
      %198 = vmatmul.f32.gmra.mxu0 %v131
      %v199 = vpop.f32.mrf.mxu0
      %v200 = vadd.f32 0.0, %v199
      %201 = vdwg.mxu0
      %v202 = vmul.f32 %v177, 1.442695
      %v203 = vpow.pop %v202
      %v204 = vmul.f32 %v203, %v200
      %vm205 = vcmask 15360
      %v207 = vsel %vm205, %v204, 0
      %vm209 = vcmask 1041408
      %v211 = vsel %vm209, %v128, 0
      %213 = vmatpush.msra.mxu0 0.0
      %214 = vmatpush.msra.mxu0 0.0
      %215 = vmatpush.msra.mxu0 0.0
      %216 = vmatpush.msra.mxu0 0.0
      %217 = vmatpush.msra.mxu0 0.0
      %218 = vmatpush.msra.mxu0 0.0
      %219 = vmatpush.msra.mxu0 0.0
      %220 = vmatpush.msra.mxu0 0.0
      %221 = vmatpush.msra.mxu0 0.0
      %222 = vmatpush.msra.mxu0 0.0
      %223 = vmatpush.msra.mxu0 0.0
      %224 = vmatpush.msra.mxu0 0.0
      %225 = vmatpush.msra.mxu0 0.0
      %226 = vmatpush.msra.mxu0 0.0
      %227 = vmatpush.msra.mxu0 0.0
      %228 = vmatpush.msra.mxu0 %v211
      %229 = vmatmul.f32.gmra.mxu0 %v207
      %v230 = vpop.f32.mrf.mxu0
      %v231 = vadd.f32 0.0, %v230
      %232 = vdwg.mxu0
      %v234 = vsel %vm205, %v203, 0
      %236 = vmatpush.msra.mxu0 0.0
      %237 = vmatpush.msra.mxu0 0.0
      %238 = vmatpush.msra.mxu0 0.0
      %239 = vmatpush.msra.mxu0 0.0
      %240 = vmatpush.msra.mxu0 0.0
      %241 = vmatpush.msra.mxu0 0.0
      %242 = vmatpush.msra.mxu0 0.0
      %243 = vmatpush.msra.mxu0 0.0
      %244 = vmatpush.msra.mxu0 0.0
      %245 = vmatpush.msra.mxu0 0.0
      %246 = vmatpush.msra.mxu0 0.0
      %247 = vmatpush.msra.mxu0 0.0
      %248 = vmatpush.msra.mxu0 0.0
      %249 = vmatpush.msra.mxu0 0.0
      %250 = vmatpush.msra.mxu0 0.0
      %251 = vmatpush.msra.mxu0 %v211
      %252 = vmatmul.f32.gmra.mxu0 %v234
      %v253 = vpop.f32.mrf.mxu0
      %v254 = vadd.f32 0.0, %v253
      %255 = vdwg.mxu0
      %v256 = vrcp.pop %v254
      %v257 = vmul.f32 %v254, %v256
      %v258 = vsub.f32 1.0, %v257
      %v259 = vmul.f32 %v256, %v258
      %v260 = vadd.f32 %v256, %v259
      %vm261 = vweird.f32 %v254
      %vm262 = vweird.f32 %v256
      %vm263 = vmor %vm261, %vm262
      %v264 = vsel %vm263, %v256, %v260
      %v265 = vand.u32 2147483647, %v254
      %vm266 = vcmp.eq.f32.partialorder %v265, 8.507059e+37
      %v267 = vand.u32 %v254, 2147483648
      %v268 = vor.u32 1.1754944e-38, %v267
      %v269 = vsel %vm266, %v268, %v264
      %v270 = vmul.f32 %v231, %v269
      %v271 = vmul.f32 %v154, %v270
      %v273 = vsel %vm129, %v121, 0
      %275 = vmatpush.msra.mxu0 0.0
      %276 = vmatpush.msra.mxu0 0.0
      %277 = vmatpush.msra.mxu0 0.0
      %278 = vmatpush.msra.mxu0 0.0
      %279 = vmatpush.msra.mxu0 0.0
      %280 = vmatpush.msra.mxu0 0.0
      %281 = vmatpush.msra.mxu0 0.0
      %282 = vmatpush.msra.mxu0 0.0
      %283 = vmatpush.msra.mxu0 0.0
      %284 = vmatpush.msra.mxu0 0.0
      %285 = vmatpush.msra.mxu0 0.0
      %286 = vmatpush.msra.mxu0 0.0
      %287 = vmatpush.msra.mxu0 0.0
      %288 = vmatpush.msra.mxu0 0.0
      %289 = vmatpush.msra.mxu0 0.0
      %290 = vmatpush.msra.mxu0 %v134
      %291 = vmatmul.f32.gmra.mxu0 %v273
      %v292 = vpop.f32.mrf.mxu0
      %v293 = vadd.f32 0.0, %v292
      %294 = vdwg.mxu0
      %295 = vmatpush.msra.mxu0 0.0
      %296 = vmatpush.msra.mxu0 0.0
      %297 = vmatpush.msra.mxu0 0.0
      %298 = vmatpush.msra.mxu0 0.0
      %299 = vmatpush.msra.mxu0 0.0
      %300 = vmatpush.msra.mxu0 0.0
      %301 = vmatpush.msra.mxu0 0.0
      %302 = vmatpush.msra.mxu0 0.0
      %303 = vmatpush.msra.mxu0 0.0
      %304 = vmatpush.msra.mxu0 0.0
      %305 = vmatpush.msra.mxu0 0.0
      %306 = vmatpush.msra.mxu0 0.0
      %307 = vmatpush.msra.mxu0 0.0
      %308 = vmatpush.msra.mxu0 0.0
      %309 = vmatpush.msra.mxu0 0.0
      %310 = vmatpush.msra.mxu0 %v157
      %311 = vmatmul.f32.gmra.mxu0 %v273
      %v312 = vpop.f32.mrf.mxu0
      %v313 = vadd.f32 0.0, %v312
      %314 = vdwg.mxu0
      %315 = vmatpush.msra.mxu0 0.0
      %316 = vmatpush.msra.mxu0 0.0
      %317 = vmatpush.msra.mxu0 0.0
      %318 = vmatpush.msra.mxu0 0.0
      %319 = vmatpush.msra.mxu0 0.0
      %320 = vmatpush.msra.mxu0 0.0
      %321 = vmatpush.msra.mxu0 0.0
      %322 = vmatpush.msra.mxu0 0.0
      %323 = vmatpush.msra.mxu0 0.0
      %324 = vmatpush.msra.mxu0 0.0
      %325 = vmatpush.msra.mxu0 0.0
      %326 = vmatpush.msra.mxu0 0.0
      %327 = vmatpush.msra.mxu0 0.0
      %328 = vmatpush.msra.mxu0 0.0
      %329 = vmatpush.msra.mxu0 0.0
      %330 = vmatpush.msra.mxu0 %v180
      %331 = vmatmul.f32.gmra.mxu0 %v273
      %v332 = vpop.f32.mrf.mxu0
      %v333 = vadd.f32 0.0, %v332
      %334 = vdwg.mxu0
      %v335 = vmul.f32 %v313, 1.442695
      %v336 = vpow.pop %v335
      %v337 = vmul.f32 %v336, %v333
      %v339 = vsel %vm205, %v337, 0
      %341 = vmatpush.msra.mxu0 0.0
      %342 = vmatpush.msra.mxu0 0.0
      %343 = vmatpush.msra.mxu0 0.0
      %344 = vmatpush.msra.mxu0 0.0
      %345 = vmatpush.msra.mxu0 0.0
      %346 = vmatpush.msra.mxu0 0.0
      %347 = vmatpush.msra.mxu0 0.0
      %348 = vmatpush.msra.mxu0 0.0
      %349 = vmatpush.msra.mxu0 0.0
      %350 = vmatpush.msra.mxu0 0.0
      %351 = vmatpush.msra.mxu0 0.0
      %352 = vmatpush.msra.mxu0 0.0
      %353 = vmatpush.msra.mxu0 0.0
      %354 = vmatpush.msra.mxu0 0.0
      %355 = vmatpush.msra.mxu0 0.0
      %356 = vmatpush.msra.mxu0 %v211
      %357 = vmatmul.f32.gmra.mxu0 %v339
      %v358 = vpop.f32.mrf.mxu0
      %v359 = vadd.f32 0.0, %v358
      %360 = vdwg.mxu0
      %v362 = vsel %vm205, %v336, 0
      %364 = vmatpush.msra.mxu0 0.0
      %365 = vmatpush.msra.mxu0 0.0
      %366 = vmatpush.msra.mxu0 0.0
      %367 = vmatpush.msra.mxu0 0.0
      %368 = vmatpush.msra.mxu0 0.0
      %369 = vmatpush.msra.mxu0 0.0
      %370 = vmatpush.msra.mxu0 0.0
      %371 = vmatpush.msra.mxu0 0.0
      %372 = vmatpush.msra.mxu0 0.0
      %373 = vmatpush.msra.mxu0 0.0
      %374 = vmatpush.msra.mxu0 0.0
      %375 = vmatpush.msra.mxu0 0.0
      %376 = vmatpush.msra.mxu0 0.0
      %377 = vmatpush.msra.mxu0 0.0
      %378 = vmatpush.msra.mxu0 0.0
      %379 = vmatpush.msra.mxu0 %v211
      %380 = vmatmul.f32.gmra.mxu0 %v362
      %v381 = vpop.f32.mrf.mxu0
      %v382 = vadd.f32 0.0, %v381
      %383 = vdwg.mxu0
      %v384 = vrcp.pop %v382
      %v385 = vmul.f32 %v382, %v384
      %v386 = vsub.f32 1.0, %v385
      %v387 = vmul.f32 %v384, %v386
      %v388 = vadd.f32 %v384, %v387
      %vm389 = vweird.f32 %v382
      %vm390 = vweird.f32 %v384
      %vm391 = vmor %vm389, %vm390
      %v392 = vsel %vm391, %v384, %v388
      %v393 = vand.u32 2147483647, %v382
      %vm394 = vcmp.eq.f32.partialorder %v393, 8.507059e+37
      %v395 = vand.u32 %v382, 2147483648
      %v396 = vor.u32 1.1754944e-38, %v395
      %v397 = vsel %vm394, %v396, %v392
      %v398 = vmul.f32 %v359, %v397
      %v399 = vmul.f32 %v293, %v398
      %v401 = vsel %vm205, %v399, 0
      %v404 = vsel %vm209, %v125, 0
      %406 = vmatpush.msra.mxu0 0.0
      %407 = vmatpush.msra.mxu0 0.0
      %408 = vmatpush.msra.mxu0 0.0
      %409 = vmatpush.msra.mxu0 0.0
      %410 = vmatpush.msra.mxu0 0.0
      %411 = vmatpush.msra.mxu0 0.0
      %412 = vmatpush.msra.mxu0 0.0
      %413 = vmatpush.msra.mxu0 0.0
      %414 = vmatpush.msra.mxu0 0.0
      %415 = vmatpush.msra.mxu0 0.0
      %416 = vmatpush.msra.mxu0 0.0
      %417 = vmatpush.msra.mxu0 0.0
      %418 = vmatpush.msra.mxu0 0.0
      %419 = vmatpush.msra.mxu0 0.0
      %420 = vmatpush.msra.mxu0 0.0
      %421 = vmatpush.msra.mxu0 %v404
      %422 = vmatmul.f32.gmra.mxu0 %v401
      %v423 = vpop.f32.mrf.mxu0
      %v424 = vadd.f32 0.0, %v423
      %425 = vdwg.mxu0
      %v427 = vsel %vm205, %v271, 0
      %429 = vmatpush.msra.mxu0 0.0
      %430 = vmatpush.msra.mxu0 0.0
      %431 = vmatpush.msra.mxu0 0.0
      %432 = vmatpush.msra.mxu0 0.0
      %433 = vmatpush.msra.mxu0 0.0
      %434 = vmatpush.msra.mxu0 0.0
      %435 = vmatpush.msra.mxu0 0.0
      %436 = vmatpush.msra.mxu0 0.0
      %437 = vmatpush.msra.mxu0 0.0
      %438 = vmatpush.msra.mxu0 0.0
      %439 = vmatpush.msra.mxu0 0.0
      %440 = vmatpush.msra.mxu0 0.0
      %441 = vmatpush.msra.mxu0 0.0
      %442 = vmatpush.msra.mxu0 0.0
      %443 = vmatpush.msra.mxu0 0.0
      %444 = vmatpush.msra.mxu0 %v404
      %445 = vmatmul.f32.gmra.mxu0 %v427
      %v446 = vpop.f32.mrf.mxu0
      %v447 = vadd.f32 %v424, %v446
      %448 = vdwg.mxu0
      %v449 = vxor.u32 %v447, 2147483648
      %v450 = vmul.f32 %v449, 1.442695
      %v451 = vpow.pop %v450
      %v452 = vadd.f32 %v451, 1.0
      %v453 = vrcp.pop %v452
      %v454 = vmul.f32 %v452, %v453
      %v455 = vsub.f32 1.0, %v454
      %v456 = vmul.f32 %v453, %v455
      %v457 = vadd.f32 %v453, %v456
      %vm458 = vweird.f32 %v452
      %vm459 = vweird.f32 %v453
      %vm460 = vmor %vm458, %vm459
      %v461 = vsel %vm460, %v453, %v457
      %v462 = vand.u32 2147483647, %v452
      %vm463 = vcmp.eq.f32.partialorder %v462, 8.507059e+37
      %v464 = vand.u32 %v452, 2147483648
      %v465 = vor.u32 1.1754944e-38, %v464
      %v466 = vsel %vm463, %v465, %v461
      %v467 = vmul.f32 1.0, %v466
      %468 = vst.msk [vmem:[#allocation7] sm:$0x3] %vm105, %v467
    $region37: #{tpu_custom_call.1} parent=1 // pred_fallthru
      _
    // Predicated region
    $region38: #{tpu_custom_call.1} parent=1 // pred_check
      _
    $region39: #{tpu_custom_call.1} parent=1 // pred_check_branch
      %470 = sbr.rel (0) target = $region41
    $region40: #{tpu_custom_call.1} parent=1 // pred_region
      %472 = vsyncadd [#allocation6], 0
      %s474 = sshll.u32 [#allocation7], 4
      %s475 = int_to_ptr.vmem [resolvable:$true] %s474
      %s476 = sshll.u32 %s6, 4
      %s477 = int_to_ptr.hbm [resolvable:$true] %s476
      %479 = dma.vmem_to_hbm [thread:$0]  %s475, 32, %s477, [#allocation6]
    $region41: #{tpu_custom_call.1} parent=1 // pred_fallthru
      _
    // Predicated region
    $region42: #{tpu_custom_call.1} parent=1 // pred_check
      _
    $region43: #{tpu_custom_call.1} parent=1 // pred_check_branch
      %481 = sbr.rel (0) target = $region45
    $region44: #{tpu_custom_call.1} parent=1 // pred_region
      %483 = dma.done [#allocation6], 32
    $region45: #{tpu_custom_call.1} parent=1 // pred_fallthru
      _
    %484 = vsyncpa [#allocation5], 1
    %485 = vsyncpa [#allocation6], 1

</llo_original>
